<compile_context>
chip_gen: v6e
topology: v6e:2x2x1
jax: 0.10.0
libtpu: 0.0.40
codegen_flags: <defaults>
</compile_context>

<pallas_src>
import functools

import jax
import jax.numpy as jnp
from jax import lax
from jax.experimental import pallas as pl
from jax.experimental.pallas import tpu as pltpu


# ----------------------------- kernels ------------------------------------- #

def _eucl_mlr_kernel_multi_d(x_ref, a_ref, bias_ref, o_ref, acc_ref):
    """General kernel: grid (nK, nB, nD) with the reduction axis D innermost."""
    d = pl.program_id(2)

    @pl.when(d == 0)
    def _():
        acc_ref[...] = jnp.zeros_like(acc_ref)

    # Contract the LAST dim of both operands (MXU transposed-operand path, no
    # in-kernel a.T copy). Operands arrive pre-cast (bf16 by default); the
    # accumulator stays f32.
    acc_ref[...] += lax.dot_general(
        x_ref[...], a_ref[...],
        dimension_numbers=(((1,), (1,)), ((), ())),
        preferred_element_type=jnp.float32)

    @pl.when(d == pl.num_programs(2) - 1)
    def _():
        o_ref[...] = (4.0 * (acc_ref[...] - bias_ref[...])).astype(o_ref.dtype)


def _eucl_mlr_kernel_single_d(x_ref, a_ref, bias_ref, o_ref):
    """Specialized kernel when all of D fits in one tile: no scratch, fused store."""
    acc = lax.dot_general(
        x_ref[...], a_ref[...],
        dimension_numbers=(((1,), (1,)), ((), ())),
        preferred_element_type=jnp.float32)
    o_ref[...] = (4.0 * (acc - bias_ref[...])).astype(o_ref.dtype)


# ----------------------------- helpers ------------------------------------- #

def _round_up(v, m):
    return ((v + m - 1) // m) * m


def _pick_tile(dim, align, max_tile):
    """Tile size (multiple of `align`, <= max_tile) minimizing padded extent.

    If the aligned full dim fits under max_tile, use it (single tile, minimal
    padding). Otherwise scan power-of-two multiples of `align` and pick the one
    with the smallest padded extent, tie-broken toward the larger tile.
    """
    max_tile = max(align, (max_tile // align) * align)
    full = _round_up(dim, align)
    if full <= max_tile:
        return full
    best_t, best_padded = None, None
    t = align
    while t <= max_tile:
        padded = _round_up(dim, t)
        if best_padded is None or padded < best_padded or (
                padded == best_padded and t > best_t):
            best_t, best_padded = t, padded
        t *= 2
    return best_t


def _pad2(v, rows, cols):
    r, c = v.shape
    if (r, c) == (rows, cols):
        return v
    return jnp.pad(v, ((0, rows - r), (0, cols - c)))


# ----------------------------- wrapper -------------------------------------- #

def eucl_mlr(x, a_k, p_k, *, block_b=512, block_k=512, block_d=2048,
             compute_dtype=jnp.bfloat16, out_dtype=None):
    """EuclMLR forward: x (B, D), a_k (K, D), p_k (K, D) -> logits (B, K)."""
    B, D = x.shape
    K, Dk = a_k.shape
    assert Dk == D and p_k.shape == (K, D)
    out_dtype = out_dtype or x.dtype

    # B is a sublane axis (multiple of 8); K (output lanes) and D (contraction
    # lanes) are lane axes (multiples of 128). Picker minimizes padding waste.
    tB = _pick_tile(B, 8, block_b)
    tK = _pick_tile(K, 128, block_k)
    tD = _pick_tile(D, 128, block_d)
    Bp, Kp, Dp = _round_up(B, tB), _round_up(K, tK), _round_up(D, tD)

    # bias[k] = sum_d p_k[k,d]*a_k[k,d] in f32, computed once outside the
    # kernel so p_k never has to be DMA'd per grid step.
    bias = jnp.sum(p_k.astype(jnp.float32) * a_k.astype(jnp.float32),
                   axis=-1)[None, :]                                  # (1, K)

    # Pre-cast the streamed operands (halves HBM bytes); pad only if needed.
    # TODO(synk): if a_k / p_k are reused across many calls, pre-cast/pre-pad
    # them (and precompute bias) once outside this function.
    xp = _pad2(x.astype(compute_dtype), Bp, Dp)
    ap = _pad2(a_k.astype(compute_dtype), Kp, Dp)
    bp = _pad2(bias, 1, Kp)

    n_k, n_b, n_d = Kp // tK, Bp // tB, Dp // tD

    if n_d == 1:
        # Common case (D fits one tile): 2-D grid, no accumulator scratch,
        # a_k block stays resident across the inner B axis.
        grid = (n_k, n_b)
        kernel = _eucl_mlr_kernel_single_d
        in_specs = [
            pl.BlockSpec((tB, tD), lambda k, b: (b, 0)),      # x
            pl.BlockSpec((tK, tD), lambda k, b: (k, 0)),      # a_k
            pl.BlockSpec((1, tK), lambda k, b: (0, k)),       # bias
        ]
        out_specs = pl.BlockSpec((tB, tK), lambda k, b: (b, k))
        scratch_shapes = []
        dim_sem = ("parallel", "parallel")
    else:
        grid = (n_k, n_b, n_d)                                # reduction last
        kernel = _eucl_mlr_kernel_multi_d
        in_specs = [
            pl.BlockSpec((tB, tD), lambda k, b, d: (b, d)),   # x
            pl.BlockSpec((tK, tD), lambda k, b, d: (k, d)),   # a_k
            pl.BlockSpec((1, tK), lambda k, b, d: (0, k)),    # bias
        ]
        out_specs = pl.BlockSpec((tB, tK), lambda k, b, d: (b, k))
        scratch_shapes = [pltpu.VMEM((tB, tK), jnp.float32)]  # f32 accumulator
        dim_sem = ("parallel", "parallel", "arbitrary")

    out = pl.pallas_call(
        kernel,
        out_shape=jax.ShapeDtypeStruct((Bp, Kp), out_dtype),
        grid_spec=pltpu.PrefetchScalarGridSpec(
            num_scalar_prefetch=0,
            grid=grid,
            in_specs=in_specs,
            out_specs=out_specs,
            scratch_shapes=scratch_shapes,
        ),
        compiler_params=pltpu.CompilerParams(
            dimension_semantics=dim_sem,
            # 512x512x2048 bf16 default tiles use ~11 MiB double-buffered;
            # 48 MiB leaves headroom for larger caller tiles while staying
            # under v7x's 64 MiB physical VMEM (v5e/v6e have 128 MiB).
            vmem_limit_bytes=48 * 1024 * 1024,
        ),
    )(xp, ap, bp)

    return out[:B, :K]


def eucl_mlr_xla(x, a_k, p_k, out_dtype=None):
    """Plain-XLA path (matmul form) for shapes too small to amortize a kernel."""
    bias = jnp.sum(p_k.astype(jnp.float32) * a_k.astype(jnp.float32), axis=-1)
    y = 4.0 * (jnp.dot(x, a_k.T, preferred_element_type=jnp.float32) - bias[None, :])
    return y.astype(out_dtype or x.dtype)


def eucl_mlr_auto(x, a_k, p_k, **kwargs):
    """Dispatch: tiny problems (dominated by (8,128) padding and launch/DMA
    overhead) go to plain XLA; everything else uses the Pallas kernel."""
    B, D = x.shape
    K = a_k.shape[0]
    if B * K * D < (1 << 18) or K < 64 or D < 64:
        return eucl_mlr_xla(x, a_k, p_k, out_dtype=kwargs.get("out_dtype"))
    return eucl_mlr(x, a_k, p_k, **kwargs)


# ----------------------------- references ----------------------------------- #

def eucl_mlr_reference(x, a_k, p_k):
    # Literal transcription of the PyTorch forward (f32).
    xe = x[:, None, :]                                        # (B, 1, D)
    return 4.0 * jnp.sum((xe - p_k[None, :, :]) * a_k[None, :, :], axis=-1)


def eucl_mlr_mxu_reference(x, a_k, p_k):
    # Same math with bf16-rounded matmul operands and f32 bias (what the kernel
    # computes by default).
    xb = x.astype(jnp.bfloat16).astype(jnp.float32)
    ab = a_k.astype(jnp.bfloat16).astype(jnp.float32)
    bias = jnp.sum(p_k.astype(jnp.float32) * a_k.astype(jnp.float32), axis=-1)
    return 4.0 * (xb @ ab.T - bias[None, :])


# ----------------------------- test ----------------------------------------- #

if __name__ == "__main__":
    key = jax.random.PRNGKey(0)

    def make_case(case_key, batch, in_features, out_features):
        k_x, k_p, k_a = jax.random.split(case_key, 3)
        # EuclMLR.__init__ semantics: p_k ~ N(0,1)*1e-5, a_k ~ U(-stdv, stdv).
        p_k = jax.random.normal(k_p, (out_features, in_features), jnp.float32) * 1e-5
        stdv = (6.0 / (out_features + in_features)) ** 0.5
        a_k = jax.random.uniform(k_a, (out_features, in_features), jnp.float32,
                                 minval=-stdv, maxval=stdv)
        x = jax.random.normal(k_x, (batch, in_features), jnp.float32)
        return x, a_k, p_k

    k1, k2 = jax.random.split(key)

    cases = [
        # (key, batch, in_features, out_features, wrapper overrides)
        (k1, 8, 32, 16, dict()),                       # small: single-D kernel path
        (k2, 100, 1000, 300, dict()),                  # tile picker: 104x384x1024, single-D
        (k2, 100, 1000, 300,                           # forced multi-tile 3-D grid
         dict(block_b=64, block_k=128, block_d=512)),
        (k2, 100, 1000, 300,                           # f32-operand fidelity path
         dict(compute_dtype=jnp.float32)),
    ]

    for case_key, batch, din, dout, overrides in cases:
        x, a_k, p_k = make_case(case_key, batch, din, dout)
        fn = jax.jit(functools.partial(eucl_mlr, **overrides))
        out = jax.block_until_ready(fn(x, a_k, p_k))
        assert out.shape == (batch, dout)

        ref_f32 = eucl_mlr_reference(x, a_k, p_k)      # literal module semantics
        assert jnp.allclose(out, ref_f32, rtol=1e-1, atol=2e-1), \
            f"mismatch vs f32 module reference ({overrides})"

        if overrides.get("compute_dtype", jnp.bfloat16) == jnp.bfloat16:
            ref_mxu = eucl_mlr_mxu_reference(x, a_k, p_k)  # bf16 operands, f32 bias
            assert jnp.allclose(out, ref_mxu, rtol=1e-3, atol=1e-3), \
                f"mismatch vs bf16-operand reference ({overrides})"

    # Tiny-shape dispatch (plain XLA fallback) sanity check.
    x, a_k, p_k = make_case(k1, 8, 32, 16)
    out_auto = jax.block_until_ready(jax.jit(eucl_mlr_auto)(x, a_k, p_k))
    assert jnp.allclose(out_auto, eucl_mlr_reference(x, a_k, p_k),
                        rtol=1e-1, atol=2e-1)

    print("KERNEL_OK")
</pallas_src>

<mosaic_0001>
module attributes {stable_mosaic.version = 11 : i64} {
  func.func @_eucl_mlr_kernel_single_d(%arg0: i32, %arg1: i32, %arg2: memref<8x128xbf16, #tpu.memory_space<vmem>>, %arg3: memref<128x128xbf16, #tpu.memory_space<vmem>>, %arg4: memref<1x128xf32, #tpu.memory_space<vmem>>, %arg5: memref<8x128xf32, #tpu.memory_space<vmem>>) attributes {dimension_semantics = [#tpu.dimension_semantics<parallel>, #tpu.dimension_semantics<parallel>], iteration_bounds = array<i64: 1, 1>, scalar_prefetch = 0 : i64, scratch_operands = 0 : i64, tpu.core_type = #tpu.core_type<tc>, window_params = [{transform_indices = @transform_0, window_bounds = array<i64: 8, 128>}, {transform_indices = @transform_1, window_bounds = array<i64: 128, 128>}, {transform_indices = @transform_2, window_bounds = array<i64: 1, 128>}, {transform_indices = @transform_3, window_bounds = array<i64: 8, 128>}]} {
    %c0 = arith.constant 0 : index
    %c0_0 = arith.constant 0 : index
    %0 = vector.load %arg2[%c0, %c0_0] : memref<8x128xbf16, #tpu.memory_space<vmem>>, vector<8x128xbf16>
    %c0_1 = arith.constant 0 : index
    %c0_2 = arith.constant 0 : index
    %1 = vector.load %arg3[%c0_1, %c0_2] : memref<128x128xbf16, #tpu.memory_space<vmem>>, vector<128x128xbf16>
    %cst = arith.constant dense<0.000000e+00> : vector<8x128xf32>
    %2 = tpu.matmul %0, %1, %cst {dimension_numbers = #tpu.dot_dimension_numbers<[1], [1], [0], [0], [0, 0, 1, 0], [], []>} : vector<8x128xbf16>, vector<128x128xbf16>, vector<8x128xf32> -> vector<8x128xf32>
    %c0_3 = arith.constant 0 : index
    %c0_4 = arith.constant 0 : index
    %3 = vector.load %arg4[%c0_3, %c0_4] : memref<1x128xf32, #tpu.memory_space<vmem>>, vector<1x128xf32>
    %4 = vector.broadcast %3 : vector<1x128xf32> to vector<8x128xf32>
    %5 = arith.subf %2, %4 : vector<8x128xf32>
    %cst_5 = arith.constant 4.000000e+00 : f32
    %6 = vector.broadcast %cst_5 : f32 to vector<8x128xf32>
    %7 = arith.mulf %6, %5 : vector<8x128xf32>
    %c0_6 = arith.constant 0 : index
    %c0_7 = arith.constant 0 : index
    %8 = vector.load %arg5[%c0_6, %c0_7] : memref<8x128xf32, #tpu.memory_space<vmem>>, vector<8x128xf32>
    tpu.vector_store %arg5[%c0_6, %c0_7], %7 {strides = array<i32>} : memref<8x128xf32, #tpu.memory_space<vmem>>, vector<8x128xf32>,
    return
  }
  func.func @transform_0(%arg0: i32, %arg1: i32) -> (i32, i32) {
    %c0_i32 = arith.constant 0 : i32
    %c0_i32_0 = arith.constant 0 : i32
    return %arg1, %c0_i32 : i32, i32
  }
  func.func @transform_1(%arg0: i32, %arg1: i32) -> (i32, i32) {
    %c0_i32 = arith.constant 0 : i32
    %c0_i32_0 = arith.constant 0 : i32
    return %arg0, %c0_i32 : i32, i32
  }
  func.func @transform_2(%arg0: i32, %arg1: i32) -> (i32, i32) {
    %c0_i32 = arith.constant 0 : i32
    %c0_i32_0 = arith.constant 0 : i32
    return %c0_i32, %arg0 : i32, i32
  }
  func.func @transform_3(%arg0: i32, %arg1: i32) -> (i32, i32) {
    %c0_i32 = arith.constant 0 : i32
    return %arg1, %arg0 : i32, i32
  }
}

</mosaic_0001>

<llo_original>
// kernel: eucl_mlr.1
$region0: #{eucl_mlr.1}
  #allocation0 [shape = 'u32[]', space=smem, size = 0x4, offset = 0x4, fixed_abs, tag = 'smem constant byte address 0x4 - core index']
  #allocation1 [shape = 'u32[144,128]{1,0:T(1,128)}', space=vmem, size = 0x12000, scoped, tag = 'internal scratch']
  %s0 = inlined_call_operand.vmem [shape: bf16[8,128], index: 0, kind: input, shape index: {}]
  %s1 = inlined_call_operand.vmem [shape: bf16[128,128], index: 1, kind: input, shape index: {}]
  %s2 = inlined_call_operand.vmem [shape: f32[1,128], index: 2, kind: input, shape index: {}]
  %s3 = inlined_call_operand.hbm [shape: f32[8,128], index: 3, kind: output, shape index: {}]
  %s4 = sld [smem:[#allocation0]]
  $region22: #{eucl_mlr.1} parent=0
    _
  %s6 = ssub.s32 1, %s4
  %s7 = scalar_select 0, %s6, %s4
  $region1: #{eucl_mlr.1} parent=0
    #allocation2 [shape = 'u8[4096]{0}', space=vmem, size = 0x1000, scoped, tag = 'output window, operand 0, single buffered']
    #allocation3 [shape = 's32[1]{0}', space=sflag, size = 0x4, scoped, tag = 'scoped memory for eucl_mlr.1']
    %8 = vsyncpa [#allocation3], 0
    // Predicated region
    $region2: #{eucl_mlr.1} parent=1 // pred_check
      _
    $region3: #{eucl_mlr.1} parent=1 // pred_check_branch
      %10 = sbr.rel (0) target = $region5
    $region4: #{eucl_mlr.1} parent=1 // pred_region
      _
    $region5: #{eucl_mlr.1} parent=1 // pred_fallthru
      _
    // Predicated region
    $region6: #{eucl_mlr.1} parent=1 // pred_check
      _
    $region7: #{eucl_mlr.1} parent=1 // pred_check_branch
      %12 = sbr.rel (0) target = $region9
    $region8: #{eucl_mlr.1} parent=1 // pred_region
      _
    $region9: #{eucl_mlr.1} parent=1 // pred_fallthru
      _
    // Predicated region
    $region10: #{eucl_mlr.1} parent=1 // pred_check
      _
    $region11: #{eucl_mlr.1} parent=1 // pred_check_branch
      %14 = sbr.rel (0) target = $region13
    $region12: #{eucl_mlr.1} parent=1 // pred_region
      _
    $region13: #{eucl_mlr.1} parent=1 // pred_fallthru
      _
    %v16 = vld [vmem:[%s0] sm:$0xf]
    %v17 = vld [vmem:[%s1] sm:$0xf]
    %v18 = vld [vmem:[%s1 + $0x4] sm:$0xf]
    %v19 = vld [vmem:[%s1 + $0x8] sm:$0xf]
    %v20 = vld [vmem:[%s1 + $0xc] sm:$0xf]
    %v21 = vld [vmem:[%s1 + $0x10] sm:$0xf]
    %v22 = vld [vmem:[%s1 + $0x14] sm:$0xf]
    %v23 = vld [vmem:[%s1 + $0x18] sm:$0xf]
    %v24 = vld [vmem:[%s1 + $0x1c] sm:$0xf]
    %v25 = vld [vmem:[%s1 + $0x20] sm:$0xf]
    %v26 = vld [vmem:[%s1 + $0x24] sm:$0xf]
    %v27 = vld [vmem:[%s1 + $0x28] sm:$0xf]
    %v28 = vld [vmem:[%s1 + $0x2c] sm:$0xf]
    %v29 = vld [vmem:[%s1 + $0x30] sm:$0xf]
    %v30 = vld [vmem:[%s1 + $0x34] sm:$0xf]
    %v31 = vld [vmem:[%s1 + $0x38] sm:$0xf]
    %v32 = vld [vmem:[%s1 + $0x3c] sm:$0xf]
    %v49 = vunpack.c.l.b16 %v17
    %v50 = vunpack.c.l.b16 %v18
    %v51 = vunpack.c.l.b16 %v19
    %v52 = vunpack.c.l.b16 %v20
    %v53 = vunpack.c.l.b16 %v21
    %v54 = vunpack.c.l.b16 %v22
    %v55 = vunpack.c.l.b16 %v23
    %v56 = vunpack.c.l.b16 %v24
    %v57 = vunpack.c.l.b16 %v25
    %v58 = vunpack.c.l.b16 %v26
    %v59 = vunpack.c.l.b16 %v27
    %v60 = vunpack.c.l.b16 %v28
    %v61 = vunpack.c.l.b16 %v29
    %v62 = vunpack.c.l.b16 %v30
    %v63 = vunpack.c.l.b16 %v31
    %v64 = vunpack.c.l.b16 %v32
    %v65 = vpack.c.b16 %v50, %v49
    %v66 = vpack.c.b16 %v52, %v51
    %v67 = vpack.c.b16 %v54, %v53
    %v68 = vpack.c.b16 %v56, %v55
    %v69 = vpack.c.b16 %v58, %v57
    %v70 = vpack.c.b16 %v60, %v59
    %v71 = vpack.c.b16 %v62, %v61
    %v72 = vpack.c.b16 %v64, %v63
    %81 = vmatprep.subr.bf16.mxu0 0
    %82 = vmatpush1.bf16.xpose.msra.mxu0 %v72
    %83 = vmatprep.subr.bf16.mxu0 0
    %84 = vmatpush1.bf16.xpose.msra.mxu0 %v71
    %85 = vmatprep.subr.bf16.mxu0 0
    %86 = vmatpush1.bf16.xpose.msra.mxu0 %v70
    %87 = vmatprep.subr.bf16.mxu0 0
    %88 = vmatpush1.bf16.xpose.msra.mxu0 %v69
    %89 = vmatprep.subr.bf16.mxu0 0
    %90 = vmatpush1.bf16.xpose.msra.mxu0 %v68
    %91 = vmatprep.subr.bf16.mxu0 0
    %92 = vmatpush1.bf16.xpose.msra.mxu0 %v67
    %93 = vmatprep.subr.bf16.mxu0 0
    %94 = vmatpush1.bf16.xpose.msra.mxu0 %v66
    %95 = vmatprep.subr.bf16.mxu0 0
    %96 = vmatpush1.bf16.xpose.msra.mxu0 %v65
    %97 = vmatprep.subr.bf16.mxu0 0
    %98 = vmatpush2.bf16.xpose.msra.mxu0 0
    %99 = vmatprep.subr.bf16.mxu0 0
    %100 = vmatpush2.bf16.xpose.msra.mxu0 0
    %101 = vmatprep.subr.bf16.mxu0 0
    %102 = vmatpush2.bf16.xpose.msra.mxu0 0
    %103 = vmatprep.subr.bf16.mxu0 0
    %104 = vmatpush2.bf16.xpose.msra.mxu0 0
    %105 = vmatprep.subr.bf16.mxu0 0
    %106 = vmatpush2.bf16.xpose.msra.mxu0 0
    %107 = vmatprep.subr.bf16.mxu0 0
    %108 = vmatpush2.bf16.xpose.msra.mxu0 0
    %109 = vmatprep.subr.bf16.mxu0 0
    %110 = vmatpush2.bf16.xpose.msra.mxu0 0
    %111 = vmatprep.subr.bf16.mxu0 0
    %112 = vmatpush2.bf16.xpose.msra.mxu0 0
    %113 = vmatprep.mubr.bf16.mxu0 0
    %114 = vmatmul.mubr.bf16.gmra.mxu0 %v16
    %v115 = vpop.f32.mrf.mxu0
    %v116 = vadd.f32 0.0, %v115
    %v117 = vpop.f32.mrf.mxu0
    %v118 = vpop.f32.mrf.mxu0
    %v119 = vpop.f32.mrf.mxu0
    %120 = vdwg.mxu0
    %v121 = vld [vmem:[%s2] sm:$0x1]
    %v123 = vlaneseq
    %v124 = vshrl.u32 %v123, 7
    %v125 = vsub.s32 0, %v124
    %v126 = vrot.slane %v121, %v125
    %v128 = vsub.f32 %v116, %v126
    %v129 = vmul.f32 %v128, 4.0
    %130 = vst [vmem:[#allocation2] sm:$0xff] %v129
    // Predicated region
    $region14: #{eucl_mlr.1} parent=1 // pred_check
      _
    $region15: #{eucl_mlr.1} parent=1 // pred_check_branch
      %132 = sbr.rel (0) target = $region17
    $region16: #{eucl_mlr.1} parent=1 // pred_region
      %s134 = ssub.s32 128, 128
      %135 = vsyncadd [#allocation3], %s134
      %s137 = sshll.u32 [#allocation2], 4
      %s138 = int_to_ptr.vmem [resolvable:$true] %s137
      %140 = dma.vmem_to_hbm [thread:$0]  %s138, 128, %s3, [#allocation3]
    $region17: #{eucl_mlr.1} parent=1 // pred_fallthru
      _
    // Predicated region
    $region18: #{eucl_mlr.1} parent=1 // pred_check
      _
    $region19: #{eucl_mlr.1} parent=1 // pred_check_branch
      %142 = sbr.rel (0) target = $region21
    $region20: #{eucl_mlr.1} parent=1 // pred_region
      %143 = dma.done [#allocation3], 128
    $region21: #{eucl_mlr.1} parent=1 // pred_fallthru
      _
    %144 = vsyncpa [#allocation3], 1

</llo_original>
